<compile_context>
chip_gen: v5e
topology: v5e:2x2
jax: 0.10.0
libtpu: 0.0.40
codegen_flags: <defaults>
</compile_context>

<pallas_src>
import functools

import jax
import jax.numpy as jnp
from jax.experimental import pallas as pl
from jax.experimental.pallas import tpu as pltpu


# --------------------------------------------------------------------------
# Fused kernel: one grid step = one batch element, all heads together.
# --------------------------------------------------------------------------
def _fused_mha_kernel(head_num, scaling, mxu_dtype,
                      q_ref, k_ref, v_ref,
                      wq_ref, wk_ref, wv_ref, wo_ref,
                      in_b_ref, bias_k_ref, bias_v_ref, out_b_ref,
                      out_ref, wsum_ref):
    embed_dim = wq_ref.shape[0]
    head_dim = embed_dim // head_num

    def linear(x, w_ref, b):
        # F.linear(x, W, b) = x @ W.T + b ; contract x's last dim with W's last
        # dim (trans-B) so the (Dout, Din) weight is used exactly as stored.
        y = jax.lax.dot_general(
            x.astype(mxu_dtype), w_ref[...].astype(mxu_dtype),
            (((1,), (1,)), ((), ())),
            preferred_element_type=jnp.float32)
        return y + b

    bq = in_b_ref[0:1, :]
    bk = in_b_ref[1:2, :]
    bv = in_b_ref[2:3, :]

    q = linear(q_ref[...], wq_ref, bq) * scaling       # (T, E)  scaling folded here
    k = linear(k_ref[...], wk_ref, bk)                 # (S, E)
    v = linear(v_ref[...], wv_ref, bv)                 # (S, E)

    # Append the learned bias_k / bias_v position in VMEM (no HBM concat copy).
    k = jnp.concatenate([k, bias_k_ref[...]], axis=0)  # (S+1, E)
    v = jnp.concatenate([v, bias_v_ref[...]], axis=0)  # (S+1, E)

    outs = []
    wsums = []
    for h in range(head_num):                          # static unroll over heads
        sl = slice(h * head_dim, (h + 1) * head_dim)
        qh = q[:, sl]                                  # (T, D)
        kh = k[:, sl]                                  # (S+1, D)
        vh = v[:, sl]                                  # (S+1, D)

        # scores = qh @ kh.T   (contract head_dim, no explicit transpose)
        s = jax.lax.dot_general(
            qh.astype(mxu_dtype), kh.astype(mxu_dtype),
            (((1,), (1,)), ((), ())),
            preferred_element_type=jnp.float32)        # (T, S+1)

        m = jnp.max(s, axis=-1, keepdims=True)
        p = jnp.exp(s - m)
        denom = jnp.sum(p, axis=-1, keepdims=True)
        p = p * pl.reciprocal(denom, approx=True)      # EUP, off the VALU path

        o = jnp.dot(p.astype(mxu_dtype), vh.astype(mxu_dtype),
                    preferred_element_type=jnp.float32)  # (T, D)
        outs.append(o)
        wsums.append(jnp.sum(p, axis=0, keepdims=True))  # (1, S+1)

    attn = jnp.concatenate(outs, axis=1)               # (T, E) lane-dense slab

    # Output projection: attn @ Wo.T + bo
    y = jax.lax.dot_general(
        attn.astype(mxu_dtype), wo_ref[...].astype(mxu_dtype),
        (((1,), (1,)), ((), ())),
        preferred_element_type=jnp.float32) + out_b_ref[...]

    out_ref[...] = y.astype(out_ref.dtype)
    wsum_ref[...] = (jnp.concatenate(wsums, axis=0)
                     * (1.0 / head_num)).astype(wsum_ref.dtype)


# --------------------------------------------------------------------------
# Wrapper: matches MultiHeadAttention_Diff.forward
#   inputs (seq, batch, feat); returns (out (T,B,E), weight_sum (B*H, S+1))
# --------------------------------------------------------------------------
@functools.partial(jax.jit, static_argnames=("embed_dim", "head_num", "mxu_dtype"))
def mha_diff_forward(params, query, key, value, *, embed_dim, head_num,
                     mxu_dtype=jnp.float32):
    t, b, _ = query.shape
    s = key.shape[0]
    kdim = key.shape[2]
    vdim = value.shape[2]
    head_dim = embed_dim // head_num
    scaling = float(head_dim) ** -0.5
    s1 = s + 1

    # Batch-major layout so the grid shards over batch (layout plumbing only).
    q_in = jnp.transpose(query, (1, 0, 2))   # (B, T, E)
    k_in = jnp.transpose(key, (1, 0, 2))     # (B, S, kdim)
    v_in = jnp.transpose(value, (1, 0, 2))   # (B, S, vdim)

    in_bias = params["in_proj_bias"].reshape(3, embed_dim)   # rows: q, k, v bias
    bias_k = params["bias_k"].reshape(1, embed_dim)
    bias_v = params["bias_v"].reshape(1, embed_dim)
    out_b = params["out_proj_bias"].reshape(1, embed_dim)

    kernel = functools.partial(_fused_mha_kernel, head_num, scaling, mxu_dtype)

    def full2d(r, c):
        return pl.BlockSpec((r, c), lambda i: (0, 0))

    out, wsum = pl.pallas_call(
        kernel,
        out_shape=(
            jax.ShapeDtypeStruct((b, t, embed_dim), jnp.float32),
            jax.ShapeDtypeStruct((b, head_num, s1), jnp.float32),
        ),
        grid=(b,),
        in_specs=[
            pl.BlockSpec((None, t, embed_dim), lambda i: (i, 0, 0)),  # query
            pl.BlockSpec((None, s, kdim), lambda i: (i, 0, 0)),       # key
            pl.BlockSpec((None, s, vdim), lambda i: (i, 0, 0)),       # value
            full2d(embed_dim, embed_dim),   # q_proj_weight (Dout, Din)
            full2d(embed_dim, kdim),        # k_proj_weight
            full2d(embed_dim, vdim),        # v_proj_weight
            full2d(embed_dim, embed_dim),   # out_proj weight
            full2d(3, embed_dim),           # in_proj_bias rows
            full2d(1, embed_dim),           # bias_k
            full2d(1, embed_dim),           # bias_v
            full2d(1, embed_dim),           # out_proj bias
        ],
        out_specs=(
            pl.BlockSpec((None, t, embed_dim), lambda i: (i, 0, 0)),
            pl.BlockSpec((None, head_num, s1), lambda i: (i, 0, 0)),
        ),
        compiler_params=pltpu.CompilerParams(
            dimension_semantics=("parallel",),
            vmem_limit_bytes=32 * 1024 * 1024,
        ),
    )(q_in, k_in, v_in,
      params["q_proj_weight"], params["k_proj_weight"],
      params["v_proj_weight"], params["out_proj_weight"],
      in_bias, bias_k, bias_v, out_b)

    out = jnp.transpose(out, (1, 0, 2))         # (T, B, E)
    wsum = wsum.reshape(b * head_num, s1)       # ordering b*H + h, same as torch
    return out, wsum


# --------------------------------------------------------------------------
# Pure-JAX reference (mirrors the PyTorch math) for correctness checking.
# --------------------------------------------------------------------------
def mha_diff_reference(params, query, key, value, embed_dim, head_num):
    t, b, e = query.shape
    head_dim = embed_dim // head_num
    scaling = float(head_dim) ** -0.5

    q = query @ params["q_proj_weight"].T + params["in_proj_bias"][:embed_dim]
    k = key @ params["k_proj_weight"].T + params["in_proj_bias"][embed_dim:2 * embed_dim]
    v = value @ params["v_proj_weight"].T + params["in_proj_bias"][2 * embed_dim:]
    q = q * scaling
    k = jnp.concatenate([k, jnp.broadcast_to(params["bias_k"], (1, b, e))], axis=0)
    v = jnp.concatenate([v, jnp.broadcast_to(params["bias_v"], (1, b, e))], axis=0)
    qh = q.reshape(t, b * head_num, head_dim).transpose(1, 0, 2)
    kh = k.reshape(-1, b * head_num, head_dim).transpose(1, 0, 2)
    vh = v.reshape(-1, b * head_num, head_dim).transpose(1, 0, 2)
    w = jax.nn.softmax(jnp.einsum("btd,bsd->bts", qh, kh), axis=-1)
    o = jnp.einsum("bts,bsd->btd", w, vh)
    o = o.transpose(1, 0, 2).reshape(t, b, e)
    o = o @ params["out_proj_weight"].T + params["out_proj_bias"]
    return o, w.sum(axis=1) / head_num


# --------------------------------------------------------------------------
if __name__ == "__main__":
    embed_dim = 32
    head_num = 4
    kdim = 32
    vdim = 32
    T, S, B = 8, 8, 2

    key0 = jax.random.PRNGKey(0)
    ks = jax.random.split(key0, 12)

    params = {
        "q_proj_weight": 0.1 * jax.random.normal(ks[0], (embed_dim, embed_dim), jnp.float32),
        "k_proj_weight": 0.1 * jax.random.normal(ks[1], (embed_dim, kdim), jnp.float32),
        "v_proj_weight": 0.1 * jax.random.normal(ks[2], (embed_dim, vdim), jnp.float32),
        "in_proj_bias": 0.1 * jax.random.normal(ks[3], (3 * embed_dim,), jnp.float32),
        "bias_k": 0.1 * jax.random.normal(ks[4], (1, 1, embed_dim), jnp.float32),
        "bias_v": 0.1 * jax.random.normal(ks[5], (1, 1, embed_dim), jnp.float32),
        "out_proj_weight": 0.1 * jax.random.normal(ks[6], (embed_dim, embed_dim), jnp.float32),
        "out_proj_bias": 0.1 * jax.random.normal(ks[7], (embed_dim,), jnp.float32),
    }

    query = jax.random.normal(ks[8], (T, B, embed_dim), jnp.float32)
    key_in = jax.random.normal(ks[9], (S, B, kdim), jnp.float32)
    value_in = jax.random.normal(ks[10], (S, B, vdim), jnp.float32)

    ref_out, ref_w = mha_diff_reference(params, query, key_in, value_in, embed_dim, head_num)

    # f32 MXU path (default).
    out, w_sum = mha_diff_forward(params, query, key_in, value_in,
                                  embed_dim=embed_dim, head_num=head_num)
    out = jax.block_until_ready(out)
    w_sum = jax.block_until_ready(w_sum)

    assert out.shape == (T, B, embed_dim)
    assert w_sum.shape == (B * head_num, S + 1)
    assert jnp.allclose(out, ref_out, atol=2e-3, rtol=2e-3)
    assert jnp.allclose(w_sum, ref_w, atol=2e-3, rtol=2e-3)

    # bf16 MXU operands (v6e/v7x-friendly), f32 accumulation & softmax math.
    out_bf, w_bf = mha_diff_forward(params, query, key_in, value_in,
                                    embed_dim=embed_dim, head_num=head_num,
                                    mxu_dtype=jnp.bfloat16)
    out_bf = jax.block_until_ready(out_bf)
    w_bf = jax.block_until_ready(w_bf)
    assert jnp.allclose(out_bf, ref_out, atol=5e-2, rtol=5e-2)
    assert jnp.allclose(w_bf, ref_w, atol=5e-2, rtol=5e-2)

    print("KERNEL_OK")
</pallas_src>

<mosaic_0001>
module attributes {stable_mosaic.version = 11 : i64} {
  func.func @_fused_mha_kernel(%arg0: i32, %arg1: memref<1x8x32xf32, #tpu.memory_space<vmem>>, %arg2: memref<1x8x32xf32, #tpu.memory_space<vmem>>, %arg3: memref<1x8x32xf32, #tpu.memory_space<vmem>>, %arg4: memref<32x32xf32, #tpu.memory_space<vmem>>, %arg5: memref<32x32xf32, #tpu.memory_space<vmem>>, %arg6: memref<32x32xf32, #tpu.memory_space<vmem>>, %arg7: memref<32x32xf32, #tpu.memory_space<vmem>>, %arg8: memref<3x32xf32, #tpu.memory_space<vmem>>, %arg9: memref<1x32xf32, #tpu.memory_space<vmem>>, %arg10: memref<1x32xf32, #tpu.memory_space<vmem>>, %arg11: memref<1x32xf32, #tpu.memory_space<vmem>>, %arg12: memref<1x8x32xf32, #tpu.memory_space<vmem>>, %arg13: memref<1x4x9xf32, #tpu.memory_space<vmem>>) attributes {dimension_semantics = [#tpu.dimension_semantics<parallel>], iteration_bounds = array<i64: 2>, scalar_prefetch = 0 : i64, scratch_operands = 0 : i64, tpu.core_type = #tpu.core_type<tc>, window_params = [{transform_indices = @transform_0, window_bounds = array<i64: 1, 8, 32>}, {transform_indices = @transform_1, window_bounds = array<i64: 1, 8, 32>}, {transform_indices = @transform_2, window_bounds = array<i64: 1, 8, 32>}, {pipeline_mode = #tpu.pipeline_mode<synchronous>, transform_indices = @transform_3, window_bounds = array<i64: 32, 32>}, {pipeline_mode = #tpu.pipeline_mode<synchronous>, transform_indices = @transform_4, window_bounds = array<i64: 32, 32>}, {pipeline_mode = #tpu.pipeline_mode<synchronous>, transform_indices = @transform_5, window_bounds = array<i64: 32, 32>}, {pipeline_mode = #tpu.pipeline_mode<synchronous>, transform_indices = @transform_6, window_bounds = array<i64: 32, 32>}, {pipeline_mode = #tpu.pipeline_mode<synchronous>, transform_indices = @transform_7, window_bounds = array<i64: 3, 32>}, {pipeline_mode = #tpu.pipeline_mode<synchronous>, transform_indices = @transform_8, window_bounds = array<i64: 1, 32>}, {pipeline_mode = #tpu.pipeline_mode<synchronous>, transform_indices = @transform_9, window_bounds = array<i64: 1, 32>}, {pipeline_mode = #tpu.pipeline_mode<synchronous>, transform_indices = @transform_10, window_bounds = array<i64: 1, 32>}, {transform_indices = @transform_11, window_bounds = array<i64: 1, 8, 32>}, {transform_indices = @transform_12, window_bounds = array<i64: 1, 4, 9>}]} {
    %c0 = arith.constant 0 : index
    %c0_0 = arith.constant 0 : index
    %0 = vector.load %arg8[%c0, %c0_0] : memref<3x32xf32, #tpu.memory_space<vmem>>, vector<1x32xf32>
    %c1 = arith.constant 1 : index
    %c0_1 = arith.constant 0 : index
    %1 = vector.load %arg8[%c1, %c0_1] : memref<3x32xf32, #tpu.memory_space<vmem>>, vector<1x32xf32>
    %c2 = arith.constant 2 : index
    %c0_2 = arith.constant 0 : index
    %2 = vector.load %arg8[%c2, %c0_2] : memref<3x32xf32, #tpu.memory_space<vmem>>, vector<1x32xf32>
    %c0_3 = arith.constant 0 : index
    %c0_4 = arith.constant 0 : index
    %c0_5 = arith.constant 0 : index
    %3 = vector.load %arg1[%c0_3, %c0_4, %c0_5] : memref<1x8x32xf32, #tpu.memory_space<vmem>>, vector<1x8x32xf32>
    %4 = vector.shape_cast %3 : vector<1x8x32xf32> to vector<8x32xf32>
    %c0_6 = arith.constant 0 : index
    %c0_7 = arith.constant 0 : index
    %5 = vector.load %arg4[%c0_6, %c0_7] : memref<32x32xf32, #tpu.memory_space<vmem>>, vector<32x32xf32>
    %cst = arith.constant dense<0.000000e+00> : vector<8x32xf32>
    %6 = tpu.matmul %4, %5, %cst {dimension_numbers = #tpu.dot_dimension_numbers<[1], [1], [0], [0], [0, 0, 1, 0], [], []>} : vector<8x32xf32>, vector<32x32xf32>, vector<8x32xf32> -> vector<8x32xf32>
    %7 = vector.broadcast %0 : vector<1x32xf32> to vector<8x32xf32>
    %8 = arith.addf %6, %7 : vector<8x32xf32>
    %cst_8 = arith.constant 0.353553385 : f32
    %9 = vector.broadcast %cst_8 : f32 to vector<8x32xf32>
    %10 = arith.mulf %8, %9 : vector<8x32xf32>
    %c0_9 = arith.constant 0 : index
    %c0_10 = arith.constant 0 : index
    %c0_11 = arith.constant 0 : index
    %11 = vector.load %arg2[%c0_9, %c0_10, %c0_11] : memref<1x8x32xf32, #tpu.memory_space<vmem>>, vector<1x8x32xf32>
    %12 = vector.shape_cast %11 : vector<1x8x32xf32> to vector<8x32xf32>
    %c0_12 = arith.constant 0 : index
    %c0_13 = arith.constant 0 : index
    %13 = vector.load %arg5[%c0_12, %c0_13] : memref<32x32xf32, #tpu.memory_space<vmem>>, vector<32x32xf32>
    %cst_14 = arith.constant dense<0.000000e+00> : vector<8x32xf32>
    %14 = tpu.matmul %12, %13, %cst_14 {dimension_numbers = #tpu.dot_dimension_numbers<[1], [1], [0], [0], [0, 0, 1, 0], [], []>} : vector<8x32xf32>, vector<32x32xf32>, vector<8x32xf32> -> vector<8x32xf32>
    %15 = vector.broadcast %1 : vector<1x32xf32> to vector<8x32xf32>
    %16 = arith.addf %14, %15 : vector<8x32xf32>
    %c0_15 = arith.constant 0 : index
    %c0_16 = arith.constant 0 : index
    %c0_17 = arith.constant 0 : index
    %17 = vector.load %arg3[%c0_15, %c0_16, %c0_17] : memref<1x8x32xf32, #tpu.memory_space<vmem>>, vector<1x8x32xf32>
    %18 = vector.shape_cast %17 : vector<1x8x32xf32> to vector<8x32xf32>
    %c0_18 = arith.constant 0 : index
    %c0_19 = arith.constant 0 : index
    %19 = vector.load %arg6[%c0_18, %c0_19] : memref<32x32xf32, #tpu.memory_space<vmem>>, vector<32x32xf32>
    %cst_20 = arith.constant dense<0.000000e+00> : vector<8x32xf32>
    %20 = tpu.matmul %18, %19, %cst_20 {dimension_numbers = #tpu.dot_dimension_numbers<[1], [1], [0], [0], [0, 0, 1, 0], [], []>} : vector<8x32xf32>, vector<32x32xf32>, vector<8x32xf32> -> vector<8x32xf32>
    %21 = vector.broadcast %2 : vector<1x32xf32> to vector<8x32xf32>
    %22 = arith.addf %20, %21 : vector<8x32xf32>
    %c0_21 = arith.constant 0 : index
    %c0_22 = arith.constant 0 : index
    %23 = vector.load %arg9[%c0_21, %c0_22] : memref<1x32xf32, #tpu.memory_space<vmem>>, vector<1x32xf32>
    %24 = tpu.concatenate %16, %23 in 0 : vector<8x32xf32>, vector<1x32xf32> -> vector<9x32xf32>
    %c0_23 = arith.constant 0 : index
    %c0_24 = arith.constant 0 : index
    %25 = vector.load %arg10[%c0_23, %c0_24] : memref<1x32xf32, #tpu.memory_space<vmem>>, vector<1x32xf32>
    %26 = tpu.concatenate %22, %25 in 0 : vector<8x32xf32>, vector<1x32xf32> -> vector<9x32xf32>
    %27 = vector.extract_strided_slice %10 {offsets = [0, 0], sizes = [8, 8], strides = [1, 1]} : vector<8x32xf32> to vector<8x8xf32>
    %28 = vector.extract_strided_slice %24 {offsets = [0, 0], sizes = [9, 8], strides = [1, 1]} : vector<9x32xf32> to vector<9x8xf32>
    %29 = vector.extract_strided_slice %26 {offsets = [0, 0], sizes = [9, 8], strides = [1, 1]} : vector<9x32xf32> to vector<9x8xf32>
    %cst_25 = arith.constant dense<0.000000e+00> : vector<8x9xf32>
    %30 = tpu.matmul %27, %28, %cst_25 {dimension_numbers = #tpu.dot_dimension_numbers<[1], [1], [0], [0], [0, 0, 1, 0], [], []>} : vector<8x8xf32>, vector<9x8xf32>, vector<8x9xf32> -> vector<8x9xf32>
    %cst_26 = arith.constant dense<0xFF800000> : vector<8xf32>
    %31 = vector.multi_reduction <maximumf>, %30, %cst_26 [1] : vector<8x9xf32> to vector<8xf32>
    %32 = vector.shape_cast %31 : vector<8xf32> to vector<8x1xf32>
    %33 = vector.broadcast %32 : vector<8x1xf32> to vector<8x9xf32>
    %34 = arith.subf %30, %33 : vector<8x9xf32>
    %35 = math.exp %34 : vector<8x9xf32>
    %cst_27 = arith.constant dense<0.000000e+00> : vector<8xf32>
    %36 = vector.multi_reduction <add>, %35, %cst_27 [1] : vector<8x9xf32> to vector<8xf32>
    %37 = vector.shape_cast %36 : vector<8xf32> to vector<8x1xf32>
    %38 = tpu.reciprocal %37 {approx = true} : vector<8x1xf32> -> vector<8x1xf32>
    %39 = vector.broadcast %38 : vector<8x1xf32> to vector<8x9xf32>
    %40 = arith.mulf %35, %39 : vector<8x9xf32>
    %cst_28 = arith.constant dense<0.000000e+00> : vector<8x8xf32>
    %41 = tpu.matmul %40, %29, %cst_28 {dimension_numbers = #tpu.dot_dimension_numbers<[1], [0], [0], [1], [0, 0, 1, 1], [], []>} : vector<8x9xf32>, vector<9x8xf32>, vector<8x8xf32> -> vector<8x8xf32>
    %cst_29 = arith.constant dense<0.000000e+00> : vector<9xf32>
    %42 = vector.multi_reduction <add>, %40, %cst_29 [0] : vector<8x9xf32> to vector<9xf32>
    %43 = vector.shape_cast %42 : vector<9xf32> to vector<1x9xf32>
    %44 = vector.extract_strided_slice %10 {offsets = [0, 8], sizes = [8, 8], strides = [1, 1]} : vector<8x32xf32> to vector<8x8xf32>
    %45 = vector.extract_strided_slice %24 {offsets = [0, 8], sizes = [9, 8], strides = [1, 1]} : vector<9x32xf32> to vector<9x8xf32>
    %46 = vector.extract_strided_slice %26 {offsets = [0, 8], sizes = [9, 8], strides = [1, 1]} : vector<9x32xf32> to vector<9x8xf32>
    %cst_30 = arith.constant dense<0.000000e+00> : vector<8x9xf32>
    %47 = tpu.matmul %44, %45, %cst_30 {dimension_numbers = #tpu.dot_dimension_numbers<[1], [1], [0], [0], [0, 0, 1, 0], [], []>} : vector<8x8xf32>, vector<9x8xf32>, vector<8x9xf32> -> vector<8x9xf32>
    %cst_31 = arith.constant dense<0xFF800000> : vector<8xf32>
    %48 = vector.multi_reduction <maximumf>, %47, %cst_31 [1] : vector<8x9xf32> to vector<8xf32>
    %49 = vector.shape_cast %48 : vector<8xf32> to vector<8x1xf32>
    %50 = vector.broadcast %49 : vector<8x1xf32> to vector<8x9xf32>
    %51 = arith.subf %47, %50 : vector<8x9xf32>
    %52 = math.exp %51 : vector<8x9xf32>
    %cst_32 = arith.constant dense<0.000000e+00> : vector<8xf32>
    %53 = vector.multi_reduction <add>, %52, %cst_32 [1] : vector<8x9xf32> to vector<8xf32>
    %54 = vector.shape_cast %53 : vector<8xf32> to vector<8x1xf32>
    %55 = tpu.reciprocal %54 {approx = true} : vector<8x1xf32> -> vector<8x1xf32>
    %56 = vector.broadcast %55 : vector<8x1xf32> to vector<8x9xf32>
    %57 = arith.mulf %52, %56 : vector<8x9xf32>
    %cst_33 = arith.constant dense<0.000000e+00> : vector<8x8xf32>
    %58 = tpu.matmul %57, %46, %cst_33 {dimension_numbers = #tpu.dot_dimension_numbers<[1], [0], [0], [1], [0, 0, 1, 1], [], []>} : vector<8x9xf32>, vector<9x8xf32>, vector<8x8xf32> -> vector<8x8xf32>
    %cst_34 = arith.constant dense<0.000000e+00> : vector<9xf32>
    %59 = vector.multi_reduction <add>, %57, %cst_34 [0] : vector<8x9xf32> to vector<9xf32>
    %60 = vector.shape_cast %59 : vector<9xf32> to vector<1x9xf32>
    %61 = vector.extract_strided_slice %10 {offsets = [0, 16], sizes = [8, 8], strides = [1, 1]} : vector<8x32xf32> to vector<8x8xf32>
    %62 = vector.extract_strided_slice %24 {offsets = [0, 16], sizes = [9, 8], strides = [1, 1]} : vector<9x32xf32> to vector<9x8xf32>
    %63 = vector.extract_strided_slice %26 {offsets = [0, 16], sizes = [9, 8], strides = [1, 1]} : vector<9x32xf32> to vector<9x8xf32>
    %cst_35 = arith.constant dense<0.000000e+00> : vector<8x9xf32>
    %64 = tpu.matmul %61, %62, %cst_35 {dimension_numbers = #tpu.dot_dimension_numbers<[1], [1], [0], [0], [0, 0, 1, 0], [], []>} : vector<8x8xf32>, vector<9x8xf32>, vector<8x9xf32> -> vector<8x9xf32>
    %cst_36 = arith.constant dense<0xFF800000> : vector<8xf32>
    %65 = vector.multi_reduction <maximumf>, %64, %cst_36 [1] : vector<8x9xf32> to vector<8xf32>
    %66 = vector.shape_cast %65 : vector<8xf32> to vector<8x1xf32>
    %67 = vector.broadcast %66 : vector<8x1xf32> to vector<8x9xf32>
    %68 = arith.subf %64, %67 : vector<8x9xf32>
    %69 = math.exp %68 : vector<8x9xf32>
    %cst_37 = arith.constant dense<0.000000e+00> : vector<8xf32>
    %70 = vector.multi_reduction <add>, %69, %cst_37 [1] : vector<8x9xf32> to vector<8xf32>
    %71 = vector.shape_cast %70 : vector<8xf32> to vector<8x1xf32>
    %72 = tpu.reciprocal %71 {approx = true} : vector<8x1xf32> -> vector<8x1xf32>
    %73 = vector.broadcast %72 : vector<8x1xf32> to vector<8x9xf32>
    %74 = arith.mulf %69, %73 : vector<8x9xf32>
    %cst_38 = arith.constant dense<0.000000e+00> : vector<8x8xf32>
    %75 = tpu.matmul %74, %63, %cst_38 {dimension_numbers = #tpu.dot_dimension_numbers<[1], [0], [0], [1], [0, 0, 1, 1], [], []>} : vector<8x9xf32>, vector<9x8xf32>, vector<8x8xf32> -> vector<8x8xf32>
    %cst_39 = arith.constant dense<0.000000e+00> : vector<9xf32>
    %76 = vector.multi_reduction <add>, %74, %cst_39 [0] : vector<8x9xf32> to vector<9xf32>
    %77 = vector.shape_cast %76 : vector<9xf32> to vector<1x9xf32>
    %78 = vector.extract_strided_slice %10 {offsets = [0, 24], sizes = [8, 8], strides = [1, 1]} : vector<8x32xf32> to vector<8x8xf32>
    %79 = vector.extract_strided_slice %24 {offsets = [0, 24], sizes = [9, 8], strides = [1, 1]} : vector<9x32xf32> to vector<9x8xf32>
    %80 = vector.extract_strided_slice %26 {offsets = [0, 24], sizes = [9, 8], strides = [1, 1]} : vector<9x32xf32> to vector<9x8xf32>
    %cst_40 = arith.constant dense<0.000000e+00> : vector<8x9xf32>
    %81 = tpu.matmul %78, %79, %cst_40 {dimension_numbers = #tpu.dot_dimension_numbers<[1], [1], [0], [0], [0, 0, 1, 0], [], []>} : vector<8x8xf32>, vector<9x8xf32>, vector<8x9xf32> -> vector<8x9xf32>
    %cst_41 = arith.constant dense<0xFF800000> : vector<8xf32>
    %82 = vector.multi_reduction <maximumf>, %81, %cst_41 [1] : vector<8x9xf32> to vector<8xf32>
    %83 = vector.shape_cast %82 : vector<8xf32> to vector<8x1xf32>
    %84 = vector.broadcast %83 : vector<8x1xf32> to vector<8x9xf32>
    %85 = arith.subf %81, %84 : vector<8x9xf32>
    %86 = math.exp %85 : vector<8x9xf32>
    %cst_42 = arith.constant dense<0.000000e+00> : vector<8xf32>
    %87 = vector.multi_reduction <add>, %86, %cst_42 [1] : vector<8x9xf32> to vector<8xf32>
    %88 = vector.shape_cast %87 : vector<8xf32> to vector<8x1xf32>
    %89 = tpu.reciprocal %88 {approx = true} : vector<8x1xf32> -> vector<8x1xf32>
    %90 = vector.broadcast %89 : vector<8x1xf32> to vector<8x9xf32>
    %91 = arith.mulf %86, %90 : vector<8x9xf32>
    %cst_43 = arith.constant dense<0.000000e+00> : vector<8x8xf32>
    %92 = tpu.matmul %91, %80, %cst_43 {dimension_numbers = #tpu.dot_dimension_numbers<[1], [0], [0], [1], [0, 0, 1, 1], [], []>} : vector<8x9xf32>, vector<9x8xf32>, vector<8x8xf32> -> vector<8x8xf32>
    %cst_44 = arith.constant dense<0.000000e+00> : vector<9xf32>
    %93 = vector.multi_reduction <add>, %91, %cst_44 [0] : vector<8x9xf32> to vector<9xf32>
    %94 = vector.shape_cast %93 : vector<9xf32> to vector<1x9xf32>
    %95 = tpu.concatenate %41, %58, %75, %92 in 1 : vector<8x8xf32>, vector<8x8xf32>, vector<8x8xf32>, vector<8x8xf32> -> vector<8x32xf32>
    %c0_45 = arith.constant 0 : index
    %c0_46 = arith.constant 0 : index
    %96 = vector.load %arg7[%c0_45, %c0_46] : memref<32x32xf32, #tpu.memory_space<vmem>>, vector<32x32xf32>
    %cst_47 = arith.constant dense<0.000000e+00> : vector<8x32xf32>
    %97 = tpu.matmul %95, %96, %cst_47 {dimension_numbers = #tpu.dot_dimension_numbers<[1], [1], [0], [0], [0, 0, 1, 0], [], []>} : vector<8x32xf32>, vector<32x32xf32>, vector<8x32xf32> -> vector<8x32xf32>
    %c0_48 = arith.constant 0 : index
    %c0_49 = arith.constant 0 : index
    %98 = vector.load %arg11[%c0_48, %c0_49] : memref<1x32xf32, #tpu.memory_space<vmem>>, vector<1x32xf32>
    %99 = vector.broadcast %98 : vector<1x32xf32> to vector<8x32xf32>
    %100 = arith.addf %97, %99 : vector<8x32xf32>
    %c0_50 = arith.constant 0 : index
    %c0_51 = arith.constant 0 : index
    %c0_52 = arith.constant 0 : index
    %101 = vector.load %arg12[%c0_50, %c0_51, %c0_52] : memref<1x8x32xf32, #tpu.memory_space<vmem>>, vector<1x8x32xf32>
    %102 = vector.shape_cast %101 : vector<1x8x32xf32> to vector<8x32xf32>
    %103 = vector.shape_cast %100 : vector<8x32xf32> to vector<1x8x32xf32>
    tpu.vector_store %arg12[%c0_50, %c0_51, %c0_52], %103 {strides = array<i32>} : memref<1x8x32xf32, #tpu.memory_space<vmem>>, vector<1x8x32xf32>,
    %104 = tpu.concatenate %43, %60, %77, %94 in 0 : vector<1x9xf32>, vector<1x9xf32>, vector<1x9xf32>, vector<1x9xf32> -> vector<4x9xf32>
    %cst_53 = arith.constant 2.500000e-01 : f32
    %105 = vector.broadcast %cst_53 : f32 to vector<4x9xf32>
    %106 = arith.mulf %104, %105 : vector<4x9xf32>
    %c0_54 = arith.constant 0 : index
    %c0_55 = arith.constant 0 : index
    %c0_56 = arith.constant 0 : index
    %107 = vector.load %arg13[%c0_54, %c0_55, %c0_56] : memref<1x4x9xf32, #tpu.memory_space<vmem>>, vector<1x4x9xf32>
    %108 = vector.shape_cast %107 : vector<1x4x9xf32> to vector<4x9xf32>
    %109 = vector.shape_cast %106 : vector<4x9xf32> to vector<1x4x9xf32>
    tpu.vector_store %arg13[%c0_54, %c0_55, %c0_56], %109 {strides = array<i32>} : memref<1x4x9xf32, #tpu.memory_space<vmem>>, vector<1x4x9xf32>,
    return
  }
  func.func @transform_0(%arg0: i32) -> (i32, i32, i32) {
    %c0_i32 = arith.constant 0 : i32
    %c0_i32_0 = arith.constant 0 : i32
    %c0_i32_1 = arith.constant 0 : i32
    return %arg0, %c0_i32, %c0_i32_0 : i32, i32, i32
  }
  func.func @transform_1(%arg0: i32) -> (i32, i32, i32) {
    %c0_i32 = arith.constant 0 : i32
    %c0_i32_0 = arith.constant 0 : i32
    %c0_i32_1 = arith.constant 0 : i32
    return %arg0, %c0_i32, %c0_i32_0 : i32, i32, i32
  }
  func.func @transform_2(%arg0: i32) -> (i32, i32, i32) {
    %c0_i32 = arith.constant 0 : i32
    %c0_i32_0 = arith.constant 0 : i32
    %c0_i32_1 = arith.constant 0 : i32
    return %arg0, %c0_i32, %c0_i32_0 : i32, i32, i32
  }
  func.func @transform_3(%arg0: i32) -> (i32, i32) {
    %c0_i32 = arith.constant 0 : i32
    %c0_i32_0 = arith.constant 0 : i32
    %c0_i32_1 = arith.constant 0 : i32
    return %c0_i32, %c0_i32_0 : i32, i32
  }
  func.func @transform_4(%arg0: i32) -> (i32, i32) {
    %c0_i32 = arith.constant 0 : i32
    %c0_i32_0 = arith.constant 0 : i32
    %c0_i32_1 = arith.constant 0 : i32
    return %c0_i32, %c0_i32_0 : i32, i32
  }
  func.func @transform_5(%arg0: i32) -> (i32, i32) {
    %c0_i32 = arith.constant 0 : i32
    %c0_i32_0 = arith.constant 0 : i32
    %c0_i32_1 = arith.constant 0 : i32
    return %c0_i32, %c0_i32_0 : i32, i32
  }
  func.func @transform_6(%arg0: i32) -> (i32, i32) {
    %c0_i32 = arith.constant 0 : i32
    %c0_i32_0 = arith.constant 0 : i32
    %c0_i32_1 = arith.constant 0 : i32
    return %c0_i32, %c0_i32_0 : i32, i32
  }
  func.func @transform_7(%arg0: i32) -> (i32, i32) {
    %c0_i32 = arith.constant 0 : i32
    %c0_i32_0 = arith.constant 0 : i32
    %c0_i32_1 = arith.constant 0 : i32
    return %c0_i32, %c0_i32_0 : i32, i32
  }
  func.func @transform_8(%arg0: i32) -> (i32, i32) {
    %c0_i32 = arith.constant 0 : i32
    %c0_i32_0 = arith.constant 0 : i32
    %c0_i32_1 = arith.constant 0 : i32
    return %c0_i32, %c0_i32_0 : i32, i32
  }
  func.func @transform_9(%arg0: i32) -> (i32, i32) {
    %c0_i32 = arith.constant 0 : i32
    %c0_i32_0 = arith.constant 0 : i32
    %c0_i32_1 = arith.constant 0 : i32
    return %c0_i32, %c0_i32_0 : i32, i32
  }
  func.func @transform_10(%arg0: i32) -> (i32, i32) {
    %c0_i32 = arith.constant 0 : i32
    %c0_i32_0 = arith.constant 0 : i32
    %c0_i32_1 = arith.constant 0 : i32
    return %c0_i32, %c0_i32_0 : i32, i32
  }
  func.func @transform_11(%arg0: i32) -> (i32, i32, i32) {
    %c0_i32 = arith.constant 0 : i32
    %c0_i32_0 = arith.constant 0 : i32
    %c0_i32_1 = arith.constant 0 : i32
    return %arg0, %c0_i32, %c0_i32_0 : i32, i32, i32
  }
  func.func @transform_12(%arg0: i32) -> (i32, i32, i32) {
    %c0_i32 = arith.constant 0 : i32
    %c0_i32_0 = arith.constant 0 : i32
    %c0_i32_1 = arith.constant 0 : i32
    return %arg0, %c0_i32, %c0_i32_0 : i32, i32, i32
  }
}

</mosaic_0001>

<llo_original>
// kernel: mha_diff_forward.1
$region0: #{mha_diff_forward.1}
  #allocation0 [shape = 'u32[]', space=smem, size = 0x4, offset = 0x4, fixed_abs, tag = 'smem constant byte address 0x4 - core index']
  #allocation1 [shape = 'u32[72,128]{1,0:T(1,128)}', space=vmem, size = 0x9000, scoped, tag = 'internal scratch']
  %s0 = inlined_call_operand.vmem [shape: f32[2,8,32], index: 0, kind: input, shape index: {}]
  %s1 = inlined_call_operand.vmem [shape: f32[2,8,32], index: 1, kind: input, shape index: {}]
  %s2 = inlined_call_operand.vmem [shape: f32[2,8,32], index: 2, kind: input, shape index: {}]
  %s3 = inlined_call_operand.vmem [shape: f32[32,32], index: 3, kind: input, shape index: {}]
  %s4 = inlined_call_operand.vmem [shape: f32[32,32], index: 4, kind: input, shape index: {}]
  %s5 = inlined_call_operand.hbm [shape: f32[32,32], index: 5, kind: input, shape index: {}]
  %s6 = inlined_call_operand.hbm [shape: f32[32,32], index: 6, kind: input, shape index: {}]
  %s7 = inlined_call_operand.vmem [shape: f32[3,32], index: 7, kind: input, shape index: {}]
  %s8 = inlined_call_operand.vmem [shape: f32[1,32], index: 8, kind: input, shape index: {}]
  %s9 = inlined_call_operand.vmem [shape: f32[1,32], index: 9, kind: input, shape index: {}]
  %s10 = inlined_call_operand.vmem [shape: f32[1,32], index: 10, kind: input, shape index: {}]
  %s11 = inlined_call_operand.vmem [shape: f32[2,8,32], index: 11, kind: output, shape index: {0}]
  %s12 = inlined_call_operand.hbm [shape: f32[2,4,9], index: 12, kind: output, shape index: {1}]
  %13 = xla_tuple %s11, %s12
  %s14 = sld [smem:[#allocation0]]
  $region93: #{mha_diff_forward.1} parent=0
    _
  %s16 = ssub.s32 1, %s14
  %s17 = scalar_select 0, %s16, %s14
  $region1: #{mha_diff_forward.1} parent=0
    #allocation2 [shape = 'u8[16384]{0}', space=vmem, size = 0x4000, scoped, tag = 'input window, operand 5, single buffered']
    #allocation3 [shape = 's32[2]{0}', space=sflag, size = 0x8, scoped, tag = 'scoped memory for mha_diff_forward.1']
    #allocation4 [shape = 's32[2]{0}', space=sflag, size = 0x8, scoped, tag = 'scoped memory for mha_diff_forward.1']
    #allocation5 [shape = 'u8[16384]{0}', space=vmem, size = 0x4000, scoped, tag = 'input window, operand 6, single buffered']
    #allocation6 [shape = 's32[1]{0}', space=sflag, size = 0x4, scoped, tag = 'scoped memory for mha_diff_forward.1']
    #allocation7 [shape = 'u8[4096]{0}', space=vmem, size = 0x1000, scoped, tag = 'output window, operand 1']
    %18 = vsyncpa [#allocation3], 0
    %19 = vsyncpa [#allocation6], 0
    %20 = vsyncpa [#allocation4], 0
    %s21 = scalar_lea.sflag [#allocation4], 1
    %22 = vsyncpa %s21, 0
    loop: start=0, step=1, limit=4
    $region2: #{mha_diff_forward.1} parent=1 // loop_pre_header
      _
    $region3: #{mha_diff_forward.1} parent=1 // loop_header
      %s24 = sphi 0, %s28
      %p25 = scmp.ge.s32.totalorder %s24, 4
      %s34 = sphi 0, %s36
      %s37 = sphi 0, %s34
      %s38 = sphi 0, %s37
      %s54 = sphi 0, %s38
      %s60 = sphi 0, %s62
      %s63 = sphi 0, %s60
      %s64 = sphi 0, %s63
      %s80 = sphi 0, %s64
      %s86 = sphi 0, %s88
      %s89 = sphi 0, %s86
      %s90 = sphi 0, %s89
      %s106 = sphi 0, %s90
      %s110 = sphi 0, %s110
      %s112 = sphi 0, %s110
      %s113 = sphi 0, %s112
      %s127 = sphi 0, %s113
      %s131 = sphi 0, %s131
      %s133 = sphi 0, %s131
      %s134 = sphi 0, %s133
      %s148 = sphi 0, %s134
      %s152 = sphi 0, %s152
      %s154 = sphi 0, %s152
      %s155 = sphi 0, %s154
      %s169 = sphi 0, %s155
      %s173 = sphi 0, %s173
      %s175 = sphi 0, %s173
      %s176 = sphi 0, %s175
      %s190 = sphi 0, %s176
      %s194 = sphi 0, %s194
      %s196 = sphi 0, %s194
      %s197 = sphi 0, %s196
      %s211 = sphi 0, %s197
      %s215 = sphi 0, %s215
      %s217 = sphi 0, %s215
      %s218 = sphi 0, %s217
      %s232 = sphi 0, %s218
      %s236 = sphi 0, %s236
      %s238 = sphi 0, %s236
      %s239 = sphi 0, %s238
      %s253 = sphi 0, %s239
      %s257 = sphi 0, %s257
      %s259 = sphi 0, %s257
      %s260 = sphi 0, %s259
      %s274 = sphi 0, %s260
      %s280 = sphi 0, %s282
      %s283 = sphi 0, %s280
      %s284 = sphi 0, %s283
      %s300 = sphi 0, %s284
      %s306 = sphi 0, %s308
      %s309 = sphi 0, %s306
      %s310 = sphi 0, %s309
      %s326 = sphi 0, %s310
    $region4: #{mha_diff_forward.1} parent=1 // loop_header_branch
      %27 = sbr.rel (%p25) target = $region8
    $region5: #{mha_diff_forward.1} parent=1 // loop_body
      %s29 = ssub.s32 %s24, 1
      %s30 = ssub.s32 %s24, 2
      %s31 = sadd.s32 %s24, 1
      %s32 = ssub.s32 %s24, %s31
      %p33 = scmp.eq.s32.totalorder %s32, 0
      %s35 = sadd.s32 %s34, 1
      %s36 = scalar_select %p33, %s34, %s35
      %p39 = pneg %p33
      %p40 = scmp.eq.s32.totalorder %s24, 1
      %p41 = por %p39, %p40
      %p42 = scmp.ne.s32.totalorder %s34, %s37
      %p43 = scmp.eq.s32.totalorder %s24, 0
      %p44 = por %p42, %p43
      %p45 = scmp.ne.s32.totalorder %s34, %s37
      %p46 = scmp.eq.s32.totalorder %s29, 1
      %p47 = por %p45, %p46
      %p48 = scmp.ne.s32.totalorder %s37, %s38
      %p49 = scmp.eq.s32.totalorder %s29, 0
      %p50 = por %p48, %p49
      %p51 = scmp.ne.s32.totalorder %s37, %s38
      %p52 = scmp.eq.s32.totalorder %s30, 1
      %p53 = por %p51, %p52
      %p55 = scmp.ne.s32.totalorder %s38, %s54
      %p56 = scmp.eq.s32.totalorder %s30, 0
      %p57 = por %p55, %p56
      %s58 = ssub.s32 %s24, %s31
      %p59 = scmp.eq.s32.totalorder %s58, 0
      %s61 = sadd.s32 %s60, 1
      %s62 = scalar_select %p59, %s60, %s61
      %p65 = pneg %p59
      %p66 = scmp.eq.s32.totalorder %s24, 1
      %p67 = por %p65, %p66
      %p68 = scmp.ne.s32.totalorder %s60, %s63
      %p69 = scmp.eq.s32.totalorder %s24, 0
      %p70 = por %p68, %p69
      %p71 = scmp.ne.s32.totalorder %s60, %s63
      %p72 = scmp.eq.s32.totalorder %s29, 1
      %p73 = por %p71, %p72
      %p74 = scmp.ne.s32.totalorder %s63, %s64
      %p75 = scmp.eq.s32.totalorder %s29, 0
      %p76 = por %p74, %p75
      %p77 = scmp.ne.s32.totalorder %s63, %s64
      %p78 = scmp.eq.s32.totalorder %s30, 1
      %p79 = por %p77, %p78
      %p81 = scmp.ne.s32.totalorder %s64, %s80
      %p82 = scmp.eq.s32.totalorder %s30, 0
      %p83 = por %p81, %p82
      %s84 = ssub.s32 %s24, %s31
      %p85 = scmp.eq.s32.totalorder %s84, 0
      %s87 = sadd.s32 %s86, 1
      %s88 = scalar_select %p85, %s86, %s87
      %p91 = pneg %p85
      %p92 = scmp.eq.s32.totalorder %s24, 1
      %p93 = por %p91, %p92
      %p94 = scmp.ne.s32.totalorder %s86, %s89
      %p95 = scmp.eq.s32.totalorder %s24, 0
      %p96 = por %p94, %p95
      %p97 = scmp.ne.s32.totalorder %s86, %s89
      %p98 = scmp.eq.s32.totalorder %s29, 1
      %p99 = por %p97, %p98
      %p100 = scmp.ne.s32.totalorder %s89, %s90
      %p101 = scmp.eq.s32.totalorder %s29, 0
      %p102 = por %p100, %p101
      %p103 = scmp.ne.s32.totalorder %s89, %s90
      %p104 = scmp.eq.s32.totalorder %s30, 1
      %p105 = por %p103, %p104
      %p107 = scmp.ne.s32.totalorder %s90, %s106
      %p108 = scmp.eq.s32.totalorder %s30, 0
      %p109 = por %p107, %p108
      %s111 = sadd.s32 %s110, 1
      %p114 = scmp.eq.s32.totalorder %s24, 1
      %p115 = scmp.ne.s32.totalorder %s110, %s112
      %p116 = scmp.eq.s32.totalorder %s24, 0
      %p117 = por %p115, %p116
      %p118 = scmp.ne.s32.totalorder %s110, %s112
      %p119 = scmp.eq.s32.totalorder %s29, 1
      %p120 = por %p118, %p119
      %p121 = scmp.ne.s32.totalorder %s112, %s113
      %p122 = scmp.eq.s32.totalorder %s29, 0
      %p123 = por %p121, %p122
      %p124 = scmp.ne.s32.totalorder %s112, %s113
      %p125 = scmp.eq.s32.totalorder %s30, 1
      %p126 = por %p124, %p125
      %p128 = scmp.ne.s32.totalorder %s113, %s127
      %p129 = scmp.eq.s32.totalorder %s30, 0
      %p130 = por %p128, %p129
      %s132 = sadd.s32 %s131, 1
      %p135 = scmp.eq.s32.totalorder %s24, 1
      %p136 = scmp.ne.s32.totalorder %s131, %s133
      %p137 = scmp.eq.s32.totalorder %s24, 0
      %p138 = por %p136, %p137
      %p139 = scmp.ne.s32.totalorder %s131, %s133
      %p140 = scmp.eq.s32.totalorder %s29, 1
      %p141 = por %p139, %p140
      %p142 = scmp.ne.s32.totalorder %s133, %s134
      %p143 = scmp.eq.s32.totalorder %s29, 0
      %p144 = por %p142, %p143
      %p145 = scmp.ne.s32.totalorder %s133, %s134
      %p146 = scmp.eq.s32.totalorder %s30, 1
      %p147 = por %p145, %p146
      %p149 = scmp.ne.s32.totalorder %s134, %s148
      %p150 = scmp.eq.s32.totalorder %s30, 0
      %p151 = por %p149, %p150
      %s153 = sadd.s32 %s152, 1
      %p156 = scmp.eq.s32.totalorder %s24, 1
      %p157 = scmp.ne.s32.totalorder %s152, %s154
      %p158 = scmp.eq.s32.totalorder %s24, 0
      %p159 = por %p157, %p158
      %p160 = scmp.ne.s32.totalorder %s152, %s154
      %p161 = scmp.eq.s32.totalorder %s29, 1
      %p162 = por %p160, %p161
      %p163 = scmp.ne.s32.totalorder %s154, %s155
      %p164 = scmp.eq.s32.totalorder %s29, 0
      %p165 = por %p163, %p164
      %p166 = scmp.ne.s32.totalorder %s154, %s155
      %p167 = scmp.eq.s32.totalorder %s30, 1
      %p168 = por %p166, %p167
      %p170 = scmp.ne.s32.totalorder %s155, %s169
      %p171 = scmp.eq.s32.totalorder %s30, 0
      %p172 = por %p170, %p171
      %s174 = sadd.s32 %s173, 1
      %p177 = scmp.eq.s32.totalorder %s24, 1
      %p178 = scmp.ne.s32.totalorder %s173, %s175
      %p179 = scmp.eq.s32.totalorder %s24, 0
      %p180 = por %p178, %p179
      %p181 = scmp.ne.s32.totalorder %s173, %s175
      %p182 = scmp.eq.s32.totalorder %s29, 1
      %p183 = por %p181, %p182
      %p184 = scmp.ne.s32.totalorder %s175, %s176
      %p185 = scmp.eq.s32.totalorder %s29, 0
      %p186 = por %p184, %p185
      %p187 = scmp.ne.s32.totalorder %s175, %s176
      %p188 = scmp.eq.s32.totalorder %s30, 1
      %p189 = por %p187, %p188
      %p191 = scmp.ne.s32.totalorder %s176, %s190
      %p192 = scmp.eq.s32.totalorder %s30, 0
      %p193 = por %p191, %p192
      %s195 = sadd.s32 %s194, 1
      %p198 = scmp.eq.s32.totalorder %s24, 1
      %p199 = scmp.ne.s32.totalorder %s194, %s196
      %p200 = scmp.eq.s32.totalorder %s24, 0
      %p201 = por %p199, %p200
      %p202 = scmp.ne.s32.totalorder %s194, %s196
      %p203 = scmp.eq.s32.totalorder %s29, 1
      %p204 = por %p202, %p203
      %p205 = scmp.ne.s32.totalorder %s196, %s197
      %p206 = scmp.eq.s32.totalorder %s29, 0
      %p207 = por %p205, %p206
      %p208 = scmp.ne.s32.totalorder %s196, %s197
      %p209 = scmp.eq.s32.totalorder %s30, 1
      %p210 = por %p208, %p209
      %p212 = scmp.ne.s32.totalorder %s197, %s211
      %p213 = scmp.eq.s32.totalorder %s30, 0
      %p214 = por %p212, %p213
      %s216 = sadd.s32 %s215, 1
      %p219 = scmp.eq.s32.totalorder %s24, 1
      %p220 = scmp.ne.s32.totalorder %s215, %s217
      %p221 = scmp.eq.s32.totalorder %s24, 0
      %p222 = por %p220, %p221
      %p223 = scmp.ne.s32.totalorder %s215, %s217
      %p224 = scmp.eq.s32.totalorder %s29, 1
      %p225 = por %p223, %p224
      %p226 = scmp.ne.s32.totalorder %s217, %s218
      %p227 = scmp.eq.s32.totalorder %s29, 0
      %p228 = por %p226, %p227
      %p229 = scmp.ne.s32.totalorder %s217, %s218
      %p230 = scmp.eq.s32.totalorder %s30, 1
      %p231 = por %p229, %p230
      %p233 = scmp.ne.s32.totalorder %s218, %s232
      %p234 = scmp.eq.s32.totalorder %s30, 0
      %p235 = por %p233, %p234
      %s237 = sadd.s32 %s236, 1
      %p240 = scmp.eq.s32.totalorder %s24, 1
      %p241 = scmp.ne.s32.totalorder %s236, %s238
      %p242 = scmp.eq.s32.totalorder %s24, 0
      %p243 = por %p241, %p242
      %p244 = scmp.ne.s32.totalorder %s236, %s238
      %p245 = scmp.eq.s32.totalorder %s29, 1
      %p246 = por %p244, %p245
      %p247 = scmp.ne.s32.totalorder %s238, %s239
      %p248 = scmp.eq.s32.totalorder %s29, 0
      %p249 = por %p247, %p248
      %p250 = scmp.ne.s32.totalorder %s238, %s239
      %p251 = scmp.eq.s32.totalorder %s30, 1
      %p252 = por %p250, %p251
      %p254 = scmp.ne.s32.totalorder %s239, %s253
      %p255 = scmp.eq.s32.totalorder %s30, 0
      %p256 = por %p254, %p255
      %s258 = sadd.s32 %s257, 1
      %p261 = scmp.eq.s32.totalorder %s24, 1
      %p262 = scmp.ne.s32.totalorder %s257, %s259
      %p263 = scmp.eq.s32.totalorder %s24, 0
      %p264 = por %p262, %p263
      %p265 = scmp.ne.s32.totalorder %s257, %s259
      %p266 = scmp.eq.s32.totalorder %s29, 1
      %p267 = por %p265, %p266
      %p268 = scmp.ne.s32.totalorder %s259, %s260
      %p269 = scmp.eq.s32.totalorder %s29, 0
      %p270 = por %p268, %p269
      %p271 = scmp.ne.s32.totalorder %s259, %s260
      %p272 = scmp.eq.s32.totalorder %s30, 1
      %p273 = por %p271, %p272
      %p275 = scmp.ne.s32.totalorder %s260, %s274
      %p276 = scmp.eq.s32.totalorder %s30, 0
      %p277 = por %p275, %p276
      %s278 = ssub.s32 %s24, %s31
      %p279 = scmp.eq.s32.totalorder %s278, 0
      %s281 = sadd.s32 %s280, 1
      %s282 = scalar_select %p279, %s280, %s281
      %p285 = pneg %p279
      %p286 = scmp.eq.s32.totalorder %s24, 1
      %p287 = por %p285, %p286
      %p288 = scmp.ne.s32.totalorder %s280, %s283
      %p289 = scmp.eq.s32.totalorder %s24, 0
      %p290 = por %p288, %p289
      %p291 = scmp.ne.s32.totalorder %s280, %s283
      %p292 = scmp.eq.s32.totalorder %s29, 1
      %p293 = por %p291, %p292
      %p294 = scmp.ne.s32.totalorder %s283, %s284
      %p295 = scmp.eq.s32.totalorder %s29, 0
      %p296 = por %p294, %p295
      %p297 = scmp.ne.s32.totalorder %s283, %s284
      %p298 = scmp.eq.s32.totalorder %s30, 1
      %p299 = por %p297, %p298
      %p301 = scmp.ne.s32.totalorder %s284, %s300
      %p302 = scmp.eq.s32.totalorder %s30, 0
      %p303 = por %p301, %p302
      %s304 = ssub.s32 %s24, %s31
      %p305 = scmp.eq.s32.totalorder %s304, 0
      %s307 = sadd.s32 %s306, 1
      %s308 = scalar_select %p305, %s306, %s307
      %p311 = pneg %p305
      %p312 = scmp.eq.s32.totalorder %s24, 1
      %p313 = por %p311, %p312
      %p314 = scmp.ne.s32.totalorder %s306, %s309
      %p315 = scmp.eq.s32.totalorder %s24, 0
      %p316 = por %p314, %p315
      %p317 = scmp.ne.s32.totalorder %s306, %s309
      %p318 = scmp.eq.s32.totalorder %s29, 1
      %p319 = por %p317, %p318
      %p320 = scmp.ne.s32.totalorder %s309, %s310
      %p321 = scmp.eq.s32.totalorder %s29, 0
      %p322 = por %p320, %p321
      %p323 = scmp.ne.s32.totalorder %s309, %s310
      %p324 = scmp.eq.s32.totalorder %s30, 1
      %p325 = por %p323, %p324
      %p327 = scmp.ne.s32.totalorder %s310, %s326
      %p328 = scmp.eq.s32.totalorder %s30, 0
      %p329 = por %p327, %p328
      %p330 = scmp.le.s32.totalorder 1, %s24
      %p331 = scmp.lt.s32.totalorder %s24, 3
      %p332 = pnand %p330, %p331
      %p333 = pneg %p332
      // Predicated region
      $region9: #{mha_diff_forward.1} parent=5 // pred_check
        _
      $region10: #{mha_diff_forward.1} parent=5 // pred_check_branch
        %335 = sbr.rel (%p332) target = $region12
      $region11: #{mha_diff_forward.1} parent=5 // pred_region
        %s336 = ssub.s32 %s24, 1
        // Predicated region
        $region13: #{mha_diff_forward.1} parent=11 // pred_check
          %p337 = pneg %p123
        $region14: #{mha_diff_forward.1} parent=11 // pred_check_branch
          %339 = sbr.rel (%p337) target = $region16
        $region15: #{mha_diff_forward.1} parent=11 // pred_region
          _
        $region16: #{mha_diff_forward.1} parent=11 // pred_fallthru
          _
        // Predicated region
        $region17: #{mha_diff_forward.1} parent=11 // pred_check
          %p340 = pneg %p144
        $region18: #{mha_diff_forward.1} parent=11 // pred_check_branch
          %342 = sbr.rel (%p340) target = $region20
        $region19: #{mha_diff_forward.1} parent=11 // pred_region
          _
        $region20: #{mha_diff_forward.1} parent=11 // pred_fallthru
          _
        // Predicated region
        $region21: #{mha_diff_forward.1} parent=11 // pred_check
          %p343 = pneg %p165
        $region22: #{mha_diff_forward.1} parent=11 // pred_check_branch
          %345 = sbr.rel (%p343) target = $region24
        $region23: #{mha_diff_forward.1} parent=11 // pred_region
          %347 = vsyncadd [#allocation3], 0
          %s348 = sshll.u32 %s5, 4
          %s349 = int_to_ptr.hbm [resolvable:$true] %s348
          %s350 = sshll.u32 [#allocation2], 4
          %s351 = int_to_ptr.vmem [resolvable:$true] %s350
          %356 = dma.hbm_to_vmem [thread:$0]  %s349, 512, %s351, [#allocation3], 128, 128, 8
        $region24: #{mha_diff_forward.1} parent=11 // pred_fallthru
          _
        // Predicated region
        $region25: #{mha_diff_forward.1} parent=11 // pred_check
          %p357 = pneg %p186
        $region26: #{mha_diff_forward.1} parent=11 // pred_check_branch
          %359 = sbr.rel (%p357) target = $region28
        $region27: #{mha_diff_forward.1} parent=11 // pred_region
          %361 = vsyncadd [#allocation6], 0
          %s362 = sshll.u32 %s6, 4
          %s363 = int_to_ptr.hbm [resolvable:$true] %s362
          %s364 = sshll.u32 [#allocation5], 4
          %s365 = int_to_ptr.vmem [resolvable:$true] %s364
          %370 = dma.hbm_to_vmem [thread:$0]  %s363, 512, %s365, [#allocation6], 128, 128, 8
        $region28: #{mha_diff_forward.1} parent=11 // pred_fallthru
          _
        // Predicated region
        $region29: #{mha_diff_forward.1} parent=11 // pred_check
          %p371 = pneg %p207
        $region30: #{mha_diff_forward.1} parent=11 // pred_check_branch
          %373 = sbr.rel (%p371) target = $region32
        $region31: #{mha_diff_forward.1} parent=11 // pred_region
          _
        $region32: #{mha_diff_forward.1} parent=11 // pred_fallthru
          _
        // Predicated region
        $region33: #{mha_diff_forward.1} parent=11 // pred_check
          %p374 = pneg %p228
        $region34: #{mha_diff_forward.1} parent=11 // pred_check_branch
          %376 = sbr.rel (%p374) target = $region36
        $region35: #{mha_diff_forward.1} parent=11 // pred_region
          _
        $region36: #{mha_diff_forward.1} parent=11 // pred_fallthru
          _
        // Predicated region
        $region37: #{mha_diff_forward.1} parent=11 // pred_check
          %p377 = pneg %p249
        $region38: #{mha_diff_forward.1} parent=11 // pred_check_branch
          %379 = sbr.rel (%p377) target = $region40
        $region39: #{mha_diff_forward.1} parent=11 // pred_region
          _
        $region40: #{mha_diff_forward.1} parent=11 // pred_fallthru
          _
        // Predicated region
        $region41: #{mha_diff_forward.1} parent=11 // pred_check
          %p380 = pneg %p270
        $region42: #{mha_diff_forward.1} parent=11 // pred_check_branch
          %382 = sbr.rel (%p380) target = $region44
        $region43: #{mha_diff_forward.1} parent=11 // pred_region
          _
        $region44: #{mha_diff_forward.1} parent=11 // pred_fallthru
          _
      $region12: #{mha_diff_forward.1} parent=5 // pred_fallthru
        _
      %p383 = scmp.lt.s32.totalorder %s24, 2
      // Predicated region
      $region45: #{mha_diff_forward.1} parent=5 // pred_check
        %p384 = pneg %p383
      $region46: #{mha_diff_forward.1} parent=5 // pred_check_branch
        %386 = sbr.rel (%p384) target = $region48
      $region47: #{mha_diff_forward.1} parent=5 // pred_region
        // Predicated region
        $region49: #{mha_diff_forward.1} parent=47 // pred_check
          %p387 = pneg %p44
        $region50: #{mha_diff_forward.1} parent=47 // pred_check_branch
          %389 = sbr.rel (%p387) target = $region52
        $region51: #{mha_diff_forward.1} parent=47 // pred_region
          %p390 = scmp.lt.s32.totalorder %s24, 1
          %s391 = scalar_select %p390, %s24, 1
          %s392 = smul.addr %s391, 8
          %s393 = scalar_lea.vmem %s0, %s392
        $region52: #{mha_diff_forward.1} parent=47 // pred_fallthru
          _
        // Predicated region
        $region53: #{mha_diff_forward.1} parent=47 // pred_check
          %p394 = pneg %p70
        $region54: #{mha_diff_forward.1} parent=47 // pred_check_branch
          %396 = sbr.rel (%p394) target = $region56
        $region55: #{mha_diff_forward.1} parent=47 // pred_region
          %p397 = scmp.lt.s32.totalorder %s24, 1
          %s398 = scalar_select %p397, %s24, 1
          %s399 = smul.addr %s398, 8
          %s400 = scalar_lea.vmem %s1, %s399
        $region56: #{mha_diff_forward.1} parent=47 // pred_fallthru
          _
        // Predicated region
        $region57: #{mha_diff_forward.1} parent=47 // pred_check
          %p401 = pneg %p96
        $region58: #{mha_diff_forward.1} parent=47 // pred_check_branch
          %403 = sbr.rel (%p401) target = $region60
        $region59: #{mha_diff_forward.1} parent=47 // pred_region
          %p404 = scmp.lt.s32.totalorder %s24, 1
          %s405 = scalar_select %p404, %s24, 1
          %s406 = smul.addr %s405, 8
          %s407 = scalar_lea.vmem %s2, %s406
        $region60: #{mha_diff_forward.1} parent=47 // pred_fallthru
          _
      $region48: #{mha_diff_forward.1} parent=5 // pred_fallthru
        _
      %p408 = scmp.le.s32.totalorder 1, %s24
      %p409 = scmp.lt.s32.totalorder %s24, 3
      %p410 = pnand %p408, %p409
      %p411 = pneg %p410
      // Predicated region
      $region61: #{mha_diff_forward.1} parent=5 // pred_check
        _
      $region62: #{mha_diff_forward.1} parent=5 // pred_check_branch
        %413 = sbr.rel (%p410) target = $region64
      $region63: #{mha_diff_forward.1} parent=5 // pred_region
        %s414 = ssub.s32 %s24, 1
        // Predicated region
        $region65: #{mha_diff_forward.1} parent=63 // pred_check
          %p415 = pneg %p165
        $region66: #{mha_diff_forward.1} parent=63 // pred_check_branch
          %417 = sbr.rel (%p415) target = $region68
        $region67: #{mha_diff_forward.1} parent=63 // pred_region
          %419 = dma.done [#allocation3], 512
        $region68: #{mha_diff_forward.1} parent=63 // pred_fallthru
          _
        // Predicated region
        $region69: #{mha_diff_forward.1} parent=63 // pred_check
          %p420 = pneg %p186
        $region70: #{mha_diff_forward.1} parent=63 // pred_check_branch
          %422 = sbr.rel (%p420) target = $region72
        $region71: #{mha_diff_forward.1} parent=63 // pred_region
          %424 = dma.done [#allocation6], 512
        $region72: #{mha_diff_forward.1} parent=63 // pred_fallthru
          _
        %p425 = scmp.lt.s32.totalorder %s29, 1
        %s426 = scalar_select %p425, %s29, 1
        %s427 = smul.addr %s426, 8
        %s428 = scalar_lea.vmem %s0, %s427
        %p429 = pneg %p50
        %p430 = pneg %p47
        %p431 = scmp.lt.s32.totalorder %s29, 1
        %s432 = scalar_select %p431, %s29, 1
        %s433 = smul.addr %s432, 8
        %s434 = scalar_lea.vmem %s1, %s433
        %p435 = pneg %p76
        %p436 = pneg %p73
        %p437 = scmp.lt.s32.totalorder %s29, 1
        %s438 = scalar_select %p437, %s29, 1
        %s439 = smul.addr %s438, 8
        %s440 = scalar_lea.vmem %s2, %s439
        %p441 = pneg %p102
        %p442 = pneg %p99
        %p443 = pneg %p123
        %p444 = pneg %p120
        %p445 = pneg %p144
        %p446 = pneg %p141
        %p447 = pneg %p165
        %p448 = pneg %p162
        %p449 = pneg %p186
        %p450 = pneg %p183
        %p451 = pneg %p207
        %p452 = pneg %p204
        %p453 = pneg %p228
        %p454 = pneg %p225
        %p455 = pneg %p249
        %p456 = pneg %p246
        %p457 = pneg %p270
        %p458 = pneg %p267
        %p459 = pneg %p296
        %p460 = pneg %p293
        %p461 = scmp.lt.s32.totalorder %s29, 1
        %s462 = scalar_select %p461, %s29, 1
        %s463 = smul.addr %s462, 8
        %s464 = scalar_lea.vmem %s11, %s463
        %p465 = pneg %p322
        %p466 = pneg %p319
        %s467 = sand.u32 %s309, 1
        %s468 = scalar_lea.sflag [#allocation4], %s467
        %s469 = sand.u32 %s309, 1
        %s470 = smul.addr %s469, 4
        %s471 = scalar_lea.vmem [#allocation7], %s470
        %p472 = scmp.lt.s32.totalorder %s29, 1
        %s473 = scalar_select %p472, %s29, 1
        %s474 = smul.addr %s473, 8
        %s475 = scalar_lea.vmem %s0, %s474
        %p476 = scmp.lt.s32.totalorder %s29, 1
        %s477 = scalar_select %p476, %s29, 1
        %s478 = smul.addr %s477, 8
        %s479 = scalar_lea.vmem %s1, %s478
        %p480 = scmp.lt.s32.totalorder %s29, 1
        %s481 = scalar_select %p480, %s29, 1
        %s482 = smul.addr %s481, 8
        %s483 = scalar_lea.vmem %s2, %s482
        %p484 = scmp.lt.s32.totalorder %s29, 1
        %s485 = scalar_select %p484, %s29, 1
        %s486 = smul.addr %s485, 8
        %s487 = scalar_lea.vmem %s11, %s486
        %v488 = vld [vmem:[%s7] sm:$0x1]
        %v489 = vld [vmem:[%s7 + $0x1] sm:$0x1]
        %v490 = vld [vmem:[%s7 + $0x2] sm:$0x1]
        %v491 = vld [vmem:[%s475] sm:$0xff]
        %v492 = vld [vmem:[%s3] sm:$0xff]
        %v493 = vld [vmem:[%s3 + $0x8] sm:$0xff]
        %v494 = vld [vmem:[%s3 + $0x10] sm:$0xff]
        %v495 = vld [vmem:[%s3 + $0x18] sm:$0xff]
        %v496 = vperm.slane %v488, 0
        %vm497 = vcmask 261120
        %v499 = vsel %vm497, %v491, 0
        %v502 = vsel %vm497, %v492, 0
        %v505 = vsel %vm497, %v493, 0
        %v508 = vsel %vm497, %v494, 0
        %v511 = vsel %vm497, %v495, 0
        %513 = vmatpush.xpose.msra.mxu0 0.0
        %514 = vmatpush.xpose.msra.mxu0 0.0
        %515 = vmatpush.xpose.msra.mxu0 0.0
        %516 = vmatpush.xpose.msra.mxu0 0.0
        %517 = vmatpush.xpose.msra.mxu0 0.0
        %518 = vmatpush.xpose.msra.mxu0 0.0
        %519 = vmatpush.xpose.msra.mxu0 0.0
        %520 = vmatpush.xpose.msra.mxu0 0.0
        %521 = vmatpush.xpose.msra.mxu0 0.0
        %522 = vmatpush.xpose.msra.mxu0 0.0
        %523 = vmatpush.xpose.msra.mxu0 0.0
        %524 = vmatpush.xpose.msra.mxu0 0.0
        %525 = vmatpush.xpose.msra.mxu0 %v511
        %526 = vmatpush.xpose.msra.mxu0 %v508
        %527 = vmatpush.xpose.msra.mxu0 %v505
        %528 = vmatpush.xpose.msra.mxu0 %v502
        %529 = vmatmul.f32.gmra.mxu0 %v499
        %v530 = vpop.f32.mrf.mxu0
        %v531 = vadd.f32 %v496, %v530
        %532 = vdwg.mxu0
        %v533 = vmul.f32 %v531, 0.35355338
        %v534 = vld [vmem:[%s479] sm:$0xff]
        %v535 = vld [vmem:[%s4] sm:$0xff]
        %v536 = vld [vmem:[%s4 + $0x8] sm:$0xff]
        %v537 = vld [vmem:[%s4 + $0x10] sm:$0xff]
        %v538 = vld [vmem:[%s4 + $0x18] sm:$0xff]
        %v539 = vperm.slane %v489, 0
        %v541 = vsel %vm497, %v534, 0
        %v544 = vsel %vm497, %v535, 0
        %v547 = vsel %vm497, %v536, 0
        %v550 = vsel %vm497, %v537, 0
        %v553 = vsel %vm497, %v538, 0
        %555 = vmatpush.xpose.msra.mxu0 0.0
        %556 = vmatpush.xpose.msra.mxu0 0.0
        %557 = vmatpush.xpose.msra.mxu0 0.0
        %558 = vmatpush.xpose.msra.mxu0 0.0
        %559 = vmatpush.xpose.msra.mxu0 0.0
        %560 = vmatpush.xpose.msra.mxu0 0.0
        %561 = vmatpush.xpose.msra.mxu0 0.0
        %562 = vmatpush.xpose.msra.mxu0 0.0
        %563 = vmatpush.xpose.msra.mxu0 0.0
        %564 = vmatpush.xpose.msra.mxu0 0.0
        %565 = vmatpush.xpose.msra.mxu0 0.0
        %566 = vmatpush.xpose.msra.mxu0 0.0
        %567 = vmatpush.xpose.msra.mxu0 %v553
        %568 = vmatpush.xpose.msra.mxu0 %v550
        %569 = vmatpush.xpose.msra.mxu0 %v547
        %570 = vmatpush.xpose.msra.mxu0 %v544
        %571 = vmatmul.f32.gmra.mxu0 %v541
        %v572 = vpop.f32.mrf.mxu0
        %v573 = vadd.f32 %v539, %v572
        %574 = vdwg.mxu0
        %v575 = vld [vmem:[%s483] sm:$0xff]
        %v576 = vld [vmem:[#allocation2] sm:$0xff]
        %v577 = vld [vmem:[#allocation2 + $0x8] sm:$0xff]
        %v578 = vld [vmem:[#allocation2 + $0x10] sm:$0xff]
        %v579 = vld [vmem:[#allocation2 + $0x18] sm:$0xff]
        %v580 = vperm.slane %v490, 0
        %v582 = vsel %vm497, %v575, 0
        %v585 = vsel %vm497, %v576, 0
        %v588 = vsel %vm497, %v577, 0
        %v591 = vsel %vm497, %v578, 0
        %v594 = vsel %vm497, %v579, 0
        %596 = vmatpush.xpose.msra.mxu0 0.0
        %597 = vmatpush.xpose.msra.mxu0 0.0
        %598 = vmatpush.xpose.msra.mxu0 0.0
        %599 = vmatpush.xpose.msra.mxu0 0.0
        %600 = vmatpush.xpose.msra.mxu0 0.0
        %601 = vmatpush.xpose.msra.mxu0 0.0
        %602 = vmatpush.xpose.msra.mxu0 0.0
        %603 = vmatpush.xpose.msra.mxu0 0.0
        %604 = vmatpush.xpose.msra.mxu0 0.0
        %605 = vmatpush.xpose.msra.mxu0 0.0
        %606 = vmatpush.xpose.msra.mxu0 0.0
        %607 = vmatpush.xpose.msra.mxu0 0.0
        %608 = vmatpush.xpose.msra.mxu0 %v594
        %609 = vmatpush.xpose.msra.mxu0 %v591
        %610 = vmatpush.xpose.msra.mxu0 %v588
        %611 = vmatpush.xpose.msra.mxu0 %v585
        %612 = vmatmul.f32.gmra.mxu0 %v582
        %v613 = vpop.f32.mrf.mxu0
        %v614 = vadd.f32 %v580, %v613
        %615 = vdwg.mxu0
        %v616 = vld [vmem:[%s8] sm:$0x1]
        %v617 = vld [vmem:[%s9] sm:$0x1]
        %vm618 = vcmask 64512
        %v620 = vsel %vm618, %v533, 0
        %v623 = vsel %vm618, %v573, 0
        %v626 = vsel %vm618, %v616, 0
        %628 = vmatpush.xpose.msra.mxu0 0.0
        %629 = vmatpush.xpose.msra.mxu0 0.0
        %630 = vmatpush.xpose.msra.mxu0 0.0
        %631 = vmatpush.xpose.msra.mxu0 0.0
        %632 = vmatpush.xpose.msra.mxu0 0.0
        %633 = vmatpush.xpose.msra.mxu0 0.0
        %634 = vmatpush.xpose.msra.mxu0 0.0
        %635 = vmatpush.xpose.msra.mxu0 0.0
        %636 = vmatpush.xpose.msra.mxu0 0.0
        %637 = vmatpush.xpose.msra.mxu0 0.0
        %638 = vmatpush.xpose.msra.mxu0 0.0
        %639 = vmatpush.xpose.msra.mxu0 0.0
        %640 = vmatpush.xpose.msra.mxu0 0.0
        %641 = vmatpush.xpose.msra.mxu0 0.0
        %642 = vmatpush.xpose.msra.mxu0 %v626
        %643 = vmatpush.xpose.msra.mxu0 %v623
        %644 = vmatmul.f32.gmra.mxu0 %v620
        %v645 = vpop.f32.mrf.mxu0
        %v646 = vadd.f32 0.0, %v645
        %647 = vdwg.mxu0
        %vm648 = vcmask 72704
        %v649 = vsel %vm648, %v646, -inf
        %650 = vmax.xlane.f32.xlu0 %v649
        %v651 = vpop.xlane.xlu0 %650
        %v652 = vsub.f32 %v646, %v651
        %v653 = vmul.f32 %v652, 1.442695
        %v654 = vpow.pop %v653
        %v655 = vsel %vm648, %v654, 0.0
        %656 = vadd.xlane.f32.xlu0 %v655
        %v657 = vpop.xlane.xlu0 %656
        %v658 = vrcp.pop %v657
        %v659 = vmul.f32 %v654, %v658
        %v661 = vsel %vm648, %v659, 0
        %vm663 = vcmask 1040384
        %v665 = vsel %vm663, %v617, 0
        %667 = vmatpush.msra.mxu0 0.0
        %668 = vmatpush.msra.mxu0 0.0
        %669 = vmatpush.msra.mxu0 0.0
        %670 = vmatpush.msra.mxu0 0.0
        %671 = vmatpush.msra.mxu0 0.0
        %672 = vmatpush.msra.mxu0 0.0
        %673 = vmatpush.msra.mxu0 0.0
        %674 = vmatpush.msra.mxu0 0.0
        %675 = vmatpush.msra.mxu0 0.0
        %676 = vmatpush.msra.mxu0 0.0
        %677 = vmatpush.msra.mxu0 0.0
        %678 = vmatpush.msra.mxu0 0.0
        %679 = vmatpush.msra.mxu0 0.0
        %680 = vmatpush.msra.mxu0 0.0
        %681 = vmatpush.msra.mxu0 %v665
        %682 = vmatpush.msra.mxu0 %v614
        %683 = vmatmul.f32.gmra.mxu0 %v661
        %v684 = vpop.f32.mrf.mxu0
        %v685 = vadd.f32 0.0, %v684
        %686 = vdwg.mxu0
        %v687 = vsel %vm648, %v659, 0.0
        %v688 = vrot.slane %v687, 4
        %v689 = vadd.f32 %v687, %v688
        %v690 = vrot.slane %v689, 2
        %v691 = vadd.f32 %v689, %v690
        %v692 = vrot.slane %v691, 1
        %v693 = vadd.f32 %v691, %v692
        %694 = vrot.lane.b32.xlu0 %v533, 120
        %v695 = vpop.permute.xlu0 %694
        %696 = vrot.lane.b32.xlu0 %v573, 120
        %v697 = vpop.permute.xlu0 %696
        %698 = vrot.lane.b32.xlu0 %v616, 120
        %v699 = vpop.permute.xlu0 %698
        %v700 = vsel %vm618, %v695, 0
        %v702 = vsel %vm618, %v697, 0
        %v704 = vsel %vm618, %v699, 0
        %706 = vmatpush.xpose.msra.mxu0 0.0
        %707 = vmatpush.xpose.msra.mxu0 0.0
        %708 = vmatpush.xpose.msra.mxu0 0.0
        %709 = vmatpush.xpose.msra.mxu0 0.0
        %710 = vmatpush.xpose.msra.mxu0 0.0
        %711 = vmatpush.xpose.msra.mxu0 0.0
        %712 = vmatpush.xpose.msra.mxu0 0.0
        %713 = vmatpush.xpose.msra.mxu0 0.0
        %714 = vmatpush.xpose.msra.mxu0 0.0
        %715 = vmatpush.xpose.msra.mxu0 0.0
        %716 = vmatpush.xpose.msra.mxu0 0.0
        %717 = vmatpush.xpose.msra.mxu0 0.0
        %718 = vmatpush.xpose.msra.mxu0 0.0
        %719 = vmatpush.xpose.msra.mxu0 0.0
        %720 = vmatpush.xpose.msra.mxu0 %v704
        %721 = vmatpush.xpose.msra.mxu0 %v702
        %722 = vmatmul.f32.gmra.mxu0 %v700
        %v723 = vpop.f32.mrf.mxu0
        %v724 = vadd.f32 0.0, %v723
        %725 = vdwg.mxu0
        %v726 = vsel %vm648, %v724, -inf
        %727 = vmax.xlane.f32.xlu0 %v726
        %v728 = vpop.xlane.xlu0 %727
        %v729 = vsub.f32 %v724, %v728
        %v730 = vmul.f32 %v729, 1.442695
        %v731 = vpow.pop %v730
        %v732 = vsel %vm648, %v731, 0.0
        %733 = vadd.xlane.f32.xlu0 %v732
        %v734 = vpop.xlane.xlu0 %733
        %v735 = vrcp.pop %v734
        %v736 = vmul.f32 %v731, %v735
        %738 = vrot.lane.b32.xlu0 %v614, 120
        %v739 = vpop.permute.xlu0 %738
        %740 = vrot.lane.b32.xlu0 %v617, 120
        %v741 = vpop.permute.xlu0 %740
        %v744 = vsel %vm648, %v736, 0
        %v746 = vsel %vm663, %v741, 0
        %748 = vmatpush.msra.mxu0 0.0
        %749 = vmatpush.msra.mxu0 0.0
        %750 = vmatpush.msra.mxu0 0.0
        %751 = vmatpush.msra.mxu0 0.0
        %752 = vmatpush.msra.mxu0 0.0
        %753 = vmatpush.msra.mxu0 0.0
        %754 = vmatpush.msra.mxu0 0.0
        %755 = vmatpush.msra.mxu0 0.0
        %756 = vmatpush.msra.mxu0 0.0
        %757 = vmatpush.msra.mxu0 0.0
        %758 = vmatpush.msra.mxu0 0.0
        %759 = vmatpush.msra.mxu0 0.0
        %760 = vmatpush.msra.mxu0 0.0
        %761 = vmatpush.msra.mxu0 0.0
        %762 = vmatpush.msra.mxu0 %v746
        %763 = vmatpush.msra.mxu0 %v739
        %764 = vmatmul.f32.gmra.mxu0 %v744
        %v765 = vpop.f32.mrf.mxu0
        %v766 = vadd.f32 0.0, %v765
        %767 = vdwg.mxu0
        %v768 = vsel %vm648, %v736, 0.0
        %v769 = vrot.slane %v768, 4
        %v770 = vadd.f32 %v768, %v769
        %v771 = vrot.slane %v770, 2
        %v772 = vadd.f32 %v770, %v771
        %v773 = vrot.slane %v772, 1
        %v774 = vadd.f32 %v772, %v773
        %775 = vrot.lane.b32.xlu0 %v533, 112
        %v776 = vpop.permute.xlu0 %775
        %777 = vrot.lane.b32.xlu0 %v573, 112
        %v778 = vpop.permute.xlu0 %777
        %779 = vrot.lane.b32.xlu0 %v616, 112
        %v780 = vpop.permute.xlu0 %779
        %v781 = vsel %vm618, %v776, 0
        %v783 = vsel %vm618, %v778, 0
        %v785 = vsel %vm618, %v780, 0
        %787 = vmatpush.xpose.msra.mxu0 0.0
        %788 = vmatpush.xpose.msra.mxu0 0.0
        %789 = vmatpush.xpose.msra.mxu0 0.0
        %790 = vmatpush.xpose.msra.mxu0 0.0
        %791 = vmatpush.xpose.msra.mxu0 0.0
        %792 = vmatpush.xpose.msra.mxu0 0.0
        %793 = vmatpush.xpose.msra.mxu0 0.0
        %794 = vmatpush.xpose.msra.mxu0 0.0
        %795 = vmatpush.xpose.msra.mxu0 0.0
        %796 = vmatpush.xpose.msra.mxu0 0.0
        %797 = vmatpush.xpose.msra.mxu0 0.0
        %798 = vmatpush.xpose.msra.mxu0 0.0
        %799 = vmatpush.xpose.msra.mxu0 0.0
        %800 = vmatpush.xpose.msra.mxu0 0.0
        %801 = vmatpush.xpose.msra.mxu0 %v785
        %802 = vmatpush.xpose.msra.mxu0 %v783
        %803 = vmatmul.f32.gmra.mxu0 %v781
        %v804 = vpop.f32.mrf.mxu0
        %v805 = vadd.f32 0.0, %v804
        %806 = vdwg.mxu0
        %v807 = vsel %vm648, %v805, -inf
        %808 = vmax.xlane.f32.xlu0 %v807
        %v809 = vpop.xlane.xlu0 %808
        %v810 = vsub.f32 %v805, %v809
        %v811 = vmul.f32 %v810, 1.442695
        %v812 = vpow.pop %v811
        %v813 = vsel %vm648, %v812, 0.0
        %814 = vadd.xlane.f32.xlu0 %v813
        %v815 = vpop.xlane.xlu0 %814
        %v816 = vrcp.pop %v815
        %v817 = vmul.f32 %v812, %v816
        %818 = vrot.lane.b32.xlu0 %v614, 112
        %v819 = vpop.permute.xlu0 %818
        %820 = vrot.lane.b32.xlu0 %v617, 112
        %v821 = vpop.permute.xlu0 %820
        %v824 = vsel %vm648, %v817, 0
        %v826 = vsel %vm663, %v821, 0
        %828 = vmatpush.msra.mxu0 0.0
        %829 = vmatpush.msra.mxu0 0.0
        %830 = vmatpush.msra.mxu0 0.0
        %831 = vmatpush.msra.mxu0 0.0
        %832 = vmatpush.msra.mxu0 0.0
        %833 = vmatpush.msra.mxu0 0.0
        %834 = vmatpush.msra.mxu0 0.0
        %835 = vmatpush.msra.mxu0 0.0
        %836 = vmatpush.msra.mxu0 0.0
        %837 = vmatpush.msra.mxu0 0.0
        %838 = vmatpush.msra.mxu0 0.0
        %839 = vmatpush.msra.mxu0 0.0
        %840 = vmatpush.msra.mxu0 0.0
        %841 = vmatpush.msra.mxu0 0.0
        %842 = vmatpush.msra.mxu0 %v826
        %843 = vmatpush.msra.mxu0 %v819
        %844 = vmatmul.f32.gmra.mxu0 %v824
        %v845 = vpop.f32.mrf.mxu0
        %v846 = vadd.f32 0.0, %v845
        %847 = vdwg.mxu0
        %v848 = vsel %vm648, %v817, 0.0
        %v849 = vrot.slane %v848, 4
        %v850 = vadd.f32 %v848, %v849
        %v851 = vrot.slane %v850, 2
        %v852 = vadd.f32 %v850, %v851
        %v853 = vrot.slane %v852, 1
        %v854 = vadd.f32 %v852, %v853
        %855 = vrot.lane.b32.xlu0 %v533, 104
        %v856 = vpop.permute.xlu0 %855
        %857 = vrot.lane.b32.xlu0 %v573, 104
        %v858 = vpop.permute.xlu0 %857
        %859 = vrot.lane.b32.xlu0 %v616, 104
        %v860 = vpop.permute.xlu0 %859
        %v861 = vsel %vm618, %v856, 0
        %v863 = vsel %vm618, %v858, 0
        %v865 = vsel %vm618, %v860, 0
        %867 = vmatpush.xpose.msra.mxu0 0.0
        %868 = vmatpush.xpose.msra.mxu0 0.0
        %869 = vmatpush.xpose.msra.mxu0 0.0
        %870 = vmatpush.xpose.msra.mxu0 0.0
        %871 = vmatpush.xpose.msra.mxu0 0.0
        %872 = vmatpush.xpose.msra.mxu0 0.0
        %873 = vmatpush.xpose.msra.mxu0 0.0
        %874 = vmatpush.xpose.msra.mxu0 0.0
        %875 = vmatpush.xpose.msra.mxu0 0.0
        %876 = vmatpush.xpose.msra.mxu0 0.0
        %877 = vmatpush.xpose.msra.mxu0 0.0
        %878 = vmatpush.xpose.msra.mxu0 0.0
        %879 = vmatpush.xpose.msra.mxu0 0.0
        %880 = vmatpush.xpose.msra.mxu0 0.0
        %881 = vmatpush.xpose.msra.mxu0 %v865
        %882 = vmatpush.xpose.msra.mxu0 %v863
        %883 = vmatmul.f32.gmra.mxu0 %v861
        %v884 = vpop.f32.mrf.mxu0
        %v885 = vadd.f32 0.0, %v884
        %886 = vdwg.mxu0
        %v887 = vsel %vm648, %v885, -inf
        %888 = vmax.xlane.f32.xlu0 %v887
        %v889 = vpop.xlane.xlu0 %888
        %v890 = vsub.f32 %v885, %v889
        %v891 = vmul.f32 %v890, 1.442695
        %v892 = vpow.pop %v891
        %v893 = vsel %vm648, %v892, 0.0
        %894 = vadd.xlane.f32.xlu0 %v893
        %v895 = vpop.xlane.xlu0 %894
        %v896 = vrcp.pop %v895
        %v897 = vmul.f32 %v892, %v896
        %898 = vrot.lane.b32.xlu0 %v614, 104
        %v899 = vpop.permute.xlu0 %898
        %900 = vrot.lane.b32.xlu0 %v617, 104
        %v901 = vpop.permute.xlu0 %900
        %v904 = vsel %vm648, %v897, 0
        %v906 = vsel %vm663, %v901, 0
        %908 = vmatpush.msra.mxu0 0.0
        %909 = vmatpush.msra.mxu0 0.0
        %910 = vmatpush.msra.mxu0 0.0
        %911 = vmatpush.msra.mxu0 0.0
        %912 = vmatpush.msra.mxu0 0.0
        %913 = vmatpush.msra.mxu0 0.0
        %914 = vmatpush.msra.mxu0 0.0
        %915 = vmatpush.msra.mxu0 0.0
        %916 = vmatpush.msra.mxu0 0.0
        %917 = vmatpush.msra.mxu0 0.0
        %918 = vmatpush.msra.mxu0 0.0
        %919 = vmatpush.msra.mxu0 0.0
        %920 = vmatpush.msra.mxu0 0.0
        %921 = vmatpush.msra.mxu0 0.0
        %922 = vmatpush.msra.mxu0 %v906
        %923 = vmatpush.msra.mxu0 %v899
        %924 = vmatmul.f32.gmra.mxu0 %v904
        %v925 = vpop.f32.mrf.mxu0
        %v926 = vadd.f32 0.0, %v925
        %927 = vdwg.mxu0
        %v928 = vsel %vm648, %v897, 0.0
        %v929 = vrot.slane %v928, 4
        %v930 = vadd.f32 %v928, %v929
        %v931 = vrot.slane %v930, 2
        %v932 = vadd.f32 %v930, %v931
        %v933 = vrot.slane %v932, 1
        %v934 = vadd.f32 %v932, %v933
        %936 = vrot.lane.b32.xlu0 %v766, 8
        %v937 = vpop.permute.xlu0 %936
        %940 = vrot.lane.b32.xlu0 %v846, 16
        %v941 = vpop.permute.xlu0 %940
        %944 = vrot.lane.b32.xlu0 %v926, 24
        %v945 = vpop.permute.xlu0 %944
        %v947 = vsel %vm618, %v685, %v937
        %vm948 = vcmask 130048
        %v949 = vsel %vm948, %v947, %v941
        %vm950 = vcmask 195584
        %v951 = vsel %vm950, %v949, %v945
        %v952 = vld [vmem:[#allocation5] sm:$0xff]
        %v953 = vld [vmem:[#allocation5 + $0x8] sm:$0xff]
        %v954 = vld [vmem:[#allocation5 + $0x10] sm:$0xff]
        %v955 = vld [vmem:[#allocation5 + $0x18] sm:$0xff]
        %v956 = vld [vmem:[%s10] sm:$0x1]
        %v958 = vperm.slane %v956, 0
        %v961 = vsel %vm497, %v951, 0
        %v964 = vsel %vm497, %v952, 0
        %v967 = vsel %vm497, %v953, 0
        %v970 = vsel %vm497, %v954, 0
        %v973 = vsel %vm497, %v955, 0
        %975 = vmatpush.xpose.msra.mxu0 0.0
        %976 = vmatpush.xpose.msra.mxu0 0.0
        %977 = vmatpush.xpose.msra.mxu0 0.0
        %978 = vmatpush.xpose.msra.mxu0 0.0
        %979 = vmatpush.xpose.msra.mxu0 0.0
        %980 = vmatpush.xpose.msra.mxu0 0.0
        %981 = vmatpush.xpose.msra.mxu0 0.0
        %982 = vmatpush.xpose.msra.mxu0 0.0
        %983 = vmatpush.xpose.msra.mxu0 0.0
        %984 = vmatpush.xpose.msra.mxu0 0.0
        %985 = vmatpush.xpose.msra.mxu0 0.0
        %986 = vmatpush.xpose.msra.mxu0 0.0
        %987 = vmatpush.xpose.msra.mxu0 %v973
        %988 = vmatpush.xpose.msra.mxu0 %v970
        %989 = vmatpush.xpose.msra.mxu0 %v967
        %990 = vmatpush.xpose.msra.mxu0 %v964
        %991 = vmatmul.f32.gmra.mxu0 %v961
        %v992 = vpop.f32.mrf.mxu0
        %v993 = vadd.f32 %v958, %v992
        %994 = vdwg.mxu0
        %995 = vst.msk [vmem:[%s487] sm:$0xff] %vm497, %v993
        %v996 = vsel %vm663, %v693, %v774
        %vm997 = vcmask 1041408
        %v998 = vsel %vm997, %v996, %v854
        %vm999 = vcmask 1042432
        %v1000 = vsel %vm999, %v998, %v934
        %v1001 = vmul.f32 %v1000, 0.25
        %vm1002 = vcmask 68608
        %1003 = vst.msk [vmem:[%s471] sm:$0xf] %vm1002, %v1001
        %p1004 = scmp.lt.s32.totalorder %s29, 1
        %s1005 = scalar_select %p1004, %s29, 1
        %s1006 = smul.addr %s1005, 8
        %s1007 = scalar_lea.vmem %s11, %s1006
        %s1008 = sand.u32 %s309, 1
        %s1009 = scalar_lea.sflag [#allocation4], %s1008
        %s1010 = sand.u32 %s309, 1
        %s1011 = smul.addr %s1010, 4
        %s1012 = scalar_lea.vmem [#allocation7], %s1011
        // Predicated region
        $region73: #{mha_diff_forward.1} parent=63 // pred_check
          %p1013 = pneg %p293
        $region74: #{mha_diff_forward.1} parent=63 // pred_check_branch
          %1015 = sbr.rel (%p1013) target = $region76
        $region75: #{mha_diff_forward.1} parent=63 // pred_region
          _
        $region76: #{mha_diff_forward.1} parent=63 // pred_fallthru
          _
        // Predicated region
        $region77: #{mha_diff_forward.1} parent=63 // pred_check
          %p1016 = pneg %p319
        $region78: #{mha_diff_forward.1} parent=63 // pred_check_branch
          %1018 = sbr.rel (%p1016) target = $region80
        $region79: #{mha_diff_forward.1} parent=63 // pred_region
          %1020 = vsyncadd %s1009, 0
          %s1021 = smul.addr %s29, 4
          %s1022 = scalar_lea.hbm %s12, %s1021
          %s1024 = sshll.u32 %s1012, 4
          %s1025 = int_to_ptr.vmem [resolvable:$true] %s1024
          %s1026 = sshll.u32 %s1022, 4
          %s1027 = int_to_ptr.hbm [resolvable:$true] %s1026
          %1029 = dma.vmem_to_hbm [thread:$0]  %s1025, 64, %s1027, %s1009
        $region80: #{mha_diff_forward.1} parent=63 // pred_fallthru
          _
      $region64: #{mha_diff_forward.1} parent=5 // pred_fallthru
        _
      %p1030 = scmp.le.s32.totalorder 2, %s24
      // Predicated region
      $region81: #{mha_diff_forward.1} parent=5 // pred_check
        %p1031 = pneg %p1030
      $region82: #{mha_diff_forward.1} parent=5 // pred_check_branch
        %1033 = sbr.rel (%p1031) target = $region84
      $region83: #{mha_diff_forward.1} parent=5 // pred_region
        %s1034 = ssub.s32 %s24, 2
        // Predicated region
        $region85: #{mha_diff_forward.1} parent=83 // pred_check
          %p1035 = pneg %p299
        $region86: #{mha_diff_forward.1} parent=83 // pred_check_branch
          %1037 = sbr.rel (%p1035) target = $region88
        $region87: #{mha_diff_forward.1} parent=83 // pred_region
          %p1038 = scmp.lt.s32.totalorder %s30, 1
          %s1039 = scalar_select %p1038, %s30, 1
          %s1040 = smul.addr %s1039, 8
          %s1041 = scalar_lea.vmem %s11, %s1040
        $region88: #{mha_diff_forward.1} parent=83 // pred_fallthru
          _
        // Predicated region
        $region89: #{mha_diff_forward.1} parent=83 // pred_check
          %p1042 = pneg %p325
        $region90: #{mha_diff_forward.1} parent=83 // pred_check_branch
          %1044 = sbr.rel (%p1042) target = $region92
        $region91: #{mha_diff_forward.1} parent=83 // pred_region
          %s1045 = sand.u32 %s310, 1
          %s1046 = scalar_lea.sflag [#allocation4], %s1045
          %s1047 = sand.u32 %s310, 1
          %s1048 = smul.addr %s1047, 4
          %s1049 = scalar_lea.vmem [#allocation7], %s1048
          %1051 = dma.done %s1046, 64
        $region92: #{mha_diff_forward.1} parent=83 // pred_fallthru
          _
      $region84: #{mha_diff_forward.1} parent=5 // pred_fallthru
        _
    $region6: #{mha_diff_forward.1} parent=1 // loop_footer
      %s28 = sadd.s32 1, %s24
    $region7: #{mha_diff_forward.1} parent=1 // loop_footer_branch
      %23 = sbr.rel target = $region3
    $region8: #{mha_diff_forward.1} parent=1 // loop_exit
      _
    %1052 = vsyncpa [#allocation3], 1
    %s1053 = scalar_lea.sflag [#allocation3], 1
    %1054 = vsyncpa %s1053, 1
    %1055 = vsyncpa [#allocation6], 1
    %1056 = vsyncpa [#allocation4], 1
    %s1057 = scalar_lea.sflag [#allocation4], 1
    %1058 = vsyncpa %s1057, 1

</llo_original>
